<compile_context>
chip_gen: v6e
topology: v6e:2x2x1
jax: 0.10.0
libtpu: 0.0.40
codegen_flags: <defaults>
</compile_context>

<pallas_src>
import math

import jax
import jax.numpy as jnp
from jax.experimental import pallas as pl
from jax.experimental.pallas import tpu as pltpu


# ----------------------------------------------------------------------------
# Kernel
# ----------------------------------------------------------------------------
def _ffn_kernel(x_ref, w1_ref, b1_ref, w2_ref, vecs_ref, o_ref):
    # x_ref:    (tile, d_model) in the *input* dtype (f32 residual path preserved)
    # w1_ref:   (d_model, dff)  MXU-operand dtype (bf16 by default)
    # b1_ref:   (1, dff)        f32
    # w2_ref:   (dff, d_model)  MXU-operand dtype
    # vecs_ref: (3, d_model)    f32 rows: [b2, gamma, beta]
    x = x_ref[...]

    # linear1 (+bias) + relu; operands cast to the MXU dtype, f32 accumulation.
    h = jnp.dot(x.astype(w1_ref.dtype), w1_ref[...],
                preferred_element_type=jnp.float32)
    h = jnp.maximum(h + b1_ref[...], 0.0)

    # linear2; bias folded into the residual sum below.
    y = jnp.dot(h.astype(w2_ref.dtype), w2_ref[...],
                preferred_element_type=jnp.float32)

    # Residual in f32 (x kept at its original precision -> fp32 residual stream
    # for fp32 inputs, matching the PyTorch module).
    r = x.astype(jnp.float32) + y + vecs_ref[0:1, :]

    # LayerNorm over d_model, eps=1e-5 (PyTorch default); two-pass variance.
    mean = jnp.mean(r, axis=-1, keepdims=True)
    c = r - mean
    var = jnp.mean(c * c, axis=-1, keepdims=True)
    norm = c * jax.lax.rsqrt(var + 1e-5)
    o_ref[...] = (norm * vecs_ref[1:2, :] + vecs_ref[2:3, :]).astype(o_ref.dtype)


# ----------------------------------------------------------------------------
# Sizing helpers
# ----------------------------------------------------------------------------
def _round_up(x, m):
    return ((x + m - 1) // m) * m


def _vmem_cap_bytes():
    """Generation-aware VMEM budget: physical per-core VMEM minus headroom."""
    phys = 64 << 20  # conservative default = v7x per-TensorCore VMEM
    try:
        phys = int(pltpu.get_tpu_info().vmem_capacity_bytes)
    except Exception:
        # Hardware query only; the conservative default is always safe.
        pass
    # Leave ~8 MiB for compiler-internal scratch / semaphores / spill space;
    # never ask for more than ~112 MiB even on 128 MiB parts.
    return int(min(max(phys - (8 << 20), 16 << 20), 112 << 20))


def _vmem_footprint(tile, d_model, dff, x_itm, mxu_itm, out_itm, weight_bufs):
    io = 2 * tile * d_model * (x_itm + out_itm)          # double-buffered x / out tiles
    weights = weight_bufs * 2 * d_model * dff * mxu_itm  # resident W1 + W2 slabs
    vectors = weight_bufs * 8 * (dff + d_model) * 4      # b1 + packed (b2,gamma,beta), sublane-padded
    live = tile * (dff + 3 * d_model) * 4                # h / r / norm f32 temporaries
    return io + weights + vectors + live


def _pick_token_tile(n_tokens, x_dtype, mxu_dtype, d_model, dff, out_itm, vmem_cap):
    """Sublane-aligned token tile; MXU-bound kernel -> large tiles, VMEM-checked."""
    x_itm = jnp.dtype(x_dtype).itemsize
    sub = 16 if jnp.dtype(x_dtype) == jnp.dtype(jnp.bfloat16) else 8
    target = 1024 if jnp.dtype(mxu_dtype) == jnp.dtype(jnp.bfloat16) else 512
    # Shrink until the per-step footprint (sized conservatively with
    # double-buffered weights) fits the per-core VMEM budget.
    while target > sub and _vmem_footprint(
            target, d_model, dff, x_itm, jnp.dtype(mxu_dtype).itemsize,
            out_itm, 2) > vmem_cap:
        target //= 2
    if n_tokens >= 2 * target:
        return target
    # Small problem: two sublane-aligned tiles so both TensorCores (v7x) get
    # work and the pipeline still has more than one step.
    return max(sub, _round_up(pl.cdiv(n_tokens, 2), sub))


# One-time cached feature probe for pl.Buffered(1) on constant blocks.
_BUFFERED1_OK = None


def _buffered_one_supported():
    global _BUFFERED1_OK
    if _BUFFERED1_OK is None:
        try:
            def _probe(x_ref, o_ref):
                o_ref[...] = x_ref[...]

            out = pl.pallas_call(
                _probe,
                out_shape=jax.ShapeDtypeStruct((8, 128), jnp.float32),
                grid=(1,),
                in_specs=[pl.BlockSpec((8, 128), lambda i: (0, 0),
                                       pipeline_mode=pl.Buffered(1))],
                out_specs=pl.BlockSpec((8, 128), lambda i: (0, 0)),
            )(jnp.zeros((8, 128), jnp.float32))
            jax.block_until_ready(out)
            _BUFFERED1_OK = True
        except Exception:
            # Probe-only fallback; errors in the real kernel still surface.
            _BUFFERED1_OK = False
    return _BUFFERED1_OK


# ----------------------------------------------------------------------------
# Wrapper
# ----------------------------------------------------------------------------
def ffn_layer(tgt, w1, b1, w2, b2, gamma, beta, *, token_tile=None,
              mxu_dtype=jnp.bfloat16):
    """tgt: (S, B, d_model). Returns the same shape, dtype = tgt.dtype.

    mxu_dtype controls the matmul-operand dtype only; accumulation, residual
    and LayerNorm always run in f32.
    """
    S, B, d_model = tgt.shape
    dff = w1.shape[1]
    N = S * B
    mxu_dtype = jnp.dtype(mxu_dtype)

    # Pure reshape (no dtype cast, no extra HBM pass over the activations).
    x = tgt.reshape(N, d_model)
    w1c = w1.astype(mxu_dtype)
    w2c = w2.astype(mxu_dtype)
    b1_2d = b1.astype(jnp.float32).reshape(1, dff)
    vecs = jnp.stack([b2, gamma, beta]).astype(jnp.float32)  # (3, d_model)

    x_itm = jnp.dtype(tgt.dtype).itemsize
    out_itm = x_itm
    vmem_cap = _vmem_cap_bytes()

    if token_tile is None:
        token_tile = _pick_token_tile(N, tgt.dtype, mxu_dtype, d_model, dff,
                                      out_itm, vmem_cap)
    grid = (pl.cdiv(N, token_tile),)  # ragged last block: masked writes, no padding

    # NOTE: d_model / dff multiples of 128 give lane-dense (unmasked) stores
    # and full MXU tiles; non-multiples still work but waste lanes.
    # TODO(synk): for very large FFNs (d_model>=1024, dff>=4096, esp. on v7x's
    # 64 MiB per-TC VMEM) add a second "arbitrary" grid axis over dff with an
    # f32 (tile, d_model) accumulator scratch; unnecessary at Mask2Former scale.

    use_single = _buffered_one_supported()
    weight_bufs = 1 if use_single else 2

    def const_spec(shape):
        # Constant blocks (index_map always (0, 0)): single buffer saves VMEM.
        if use_single:
            return pl.BlockSpec(shape, lambda i: (0, 0),
                                pipeline_mode=pl.Buffered(1))
        return pl.BlockSpec(shape, lambda i: (0, 0))

    footprint = _vmem_footprint(token_tile, d_model, dff, x_itm,
                                mxu_dtype.itemsize, out_itm, weight_bufs)
    vmem_limit = int(min(max(int(1.4 * footprint) + (2 << 20), 32 << 20),
                         vmem_cap))

    out = pl.pallas_call(
        _ffn_kernel,
        out_shape=jax.ShapeDtypeStruct((N, d_model), tgt.dtype),
        grid_spec=pltpu.PrefetchScalarGridSpec(
            num_scalar_prefetch=0,
            grid=grid,
            in_specs=[
                pl.BlockSpec((token_tile, d_model), lambda i: (i, 0)),  # x tile
                const_spec((d_model, dff)),     # W1
                const_spec((1, dff)),           # b1
                const_spec((dff, d_model)),     # W2
                const_spec((3, d_model)),       # packed [b2, gamma, beta]
            ],
            out_specs=pl.BlockSpec((token_tile, d_model), lambda i: (i, 0)),
        ),
        compiler_params=pltpu.CompilerParams(
            dimension_semantics=("parallel",),
            vmem_limit_bytes=vmem_limit,
        ),
    )(x, w1c, b1_2d, w2c, vecs)

    return out.reshape(S, B, d_model)


# ----------------------------------------------------------------------------
# Reference + test
# ----------------------------------------------------------------------------
def xavier_uniform(key, fan_in, fan_out, dtype=jnp.float32):
    bound = math.sqrt(6.0 / (fan_in + fan_out))
    return jax.random.uniform(key, (fan_in, fan_out), dtype, -bound, bound)


def reference_ffn(tgt, w1, b1, w2, b2, gamma, beta):
    x = tgt.astype(jnp.float32)
    h = jnp.maximum(x @ w1 + b1, 0.0)
    y = h @ w2 + b2
    r = x + y
    mean = jnp.mean(r, axis=-1, keepdims=True)
    var = jnp.mean((r - mean) ** 2, axis=-1, keepdims=True)
    return ((r - mean) * jax.lax.rsqrt(var + 1e-5)) * gamma + beta


if __name__ == "__main__":
    key = jax.random.PRNGKey(0)
    k_x, k_w1, k_b1, k_w2, k_b2, k_g, k_be = jax.random.split(key, 7)

    # Small but lane-dense / MXU-friendly shapes (d_model, dff multiples of 128).
    S, B, d_model, dff = 8, 4, 128, 256

    tgt = jax.random.normal(k_x, (S, B, d_model), jnp.float32)

    # xavier_uniform on weight matrices (mirrors _reset_parameters).
    w1 = xavier_uniform(k_w1, d_model, dff)            # linear1.weight.T
    b1 = jax.random.uniform(k_b1, (dff,), jnp.float32, -0.05, 0.05)
    w2 = xavier_uniform(k_w2, dff, d_model)            # linear2.weight.T
    b2 = jax.random.uniform(k_b2, (d_model,), jnp.float32, -0.05, 0.05)
    gamma = 1.0 + jax.random.uniform(k_g, (d_model,), jnp.float32, -0.1, 0.1)
    beta = jax.random.uniform(k_be, (d_model,), jnp.float32, -0.1, 0.1)

    ref = reference_ffn(tgt, w1, b1, w2, b2, gamma, beta)

    # Exact-parity path: f32 MXU operands (matches PyTorch fp32 numerics).
    out_f32 = jax.block_until_ready(
        ffn_layer(tgt, w1, b1, w2, b2, gamma, beta, mxu_dtype=jnp.float32))
    assert out_f32.shape == (S, B, d_model)
    assert jnp.allclose(out_f32, ref, atol=1e-4, rtol=1e-4), "f32 mismatch vs reference"

    # Default fast path: bf16 MXU operands, f32 accumulation + f32 residual/LN.
    out_def = jax.block_until_ready(ffn_layer(tgt, w1, b1, w2, b2, gamma, beta))
    assert out_def.shape == (S, B, d_model)
    assert jnp.allclose(out_def, ref, atol=5e-2, rtol=5e-2), \
        "bf16-MXU mismatch vs reference"

    # Ragged token count (N = 28 not a tile multiple) -> exercises the masked
    # edge block instead of host-side pad/slice.
    S2 = 7
    tgt2 = jax.random.normal(jax.random.PRNGKey(1), (S2, B, d_model), jnp.float32)
    ref2 = reference_ffn(tgt2, w1, b1, w2, b2, gamma, beta)
    out2 = jax.block_until_ready(
        ffn_layer(tgt2, w1, b1, w2, b2, gamma, beta, mxu_dtype=jnp.float32))
    assert out2.shape == (S2, B, d_model)
    assert jnp.allclose(out2, ref2, atol=1e-4, rtol=1e-4), "ragged-N mismatch vs reference"

    # bf16 activations end-to-end (output dtype follows the input dtype).
    out_bf16 = jax.block_until_ready(
        ffn_layer(tgt.astype(jnp.bfloat16), w1, b1, w2, b2, gamma, beta))
    assert out_bf16.dtype == jnp.bfloat16
    assert jnp.allclose(out_bf16.astype(jnp.float32), ref, atol=1e-1, rtol=1e-1), \
        "bf16-input mismatch vs reference"

    print("KERNEL_OK")
</pallas_src>

<mosaic_0001>
module attributes {stable_mosaic.version = 11 : i64} {
  func.func @_probe(%arg0: i32, %arg1: memref<8x128xf32, #tpu.memory_space<vmem>>, %arg2: memref<8x128xf32, #tpu.memory_space<vmem>>) attributes {dimension_semantics = [#tpu.dimension_semantics<arbitrary>], iteration_bounds = array<i64: 1>, scalar_prefetch = 0 : i64, scratch_operands = 0 : i64, tpu.core_type = #tpu.core_type<tc>, window_params = [{pipeline_mode = #tpu.pipeline_mode<synchronous>, transform_indices = @transform_0, window_bounds = array<i64: 8, 128>}, {pipeline_mode = #tpu.pipeline_mode<synchronous>, transform_indices = @transform_1, window_bounds = array<i64: 8, 128>}]} {
    %c0 = arith.constant 0 : index
    %c0_0 = arith.constant 0 : index
    %0 = vector.load %arg1[%c0, %c0_0] : memref<8x128xf32, #tpu.memory_space<vmem>>, vector<8x128xf32>
    %c0_1 = arith.constant 0 : index
    %c0_2 = arith.constant 0 : index
    %1 = vector.load %arg2[%c0_1, %c0_2] : memref<8x128xf32, #tpu.memory_space<vmem>>, vector<8x128xf32>
    tpu.vector_store %arg2[%c0_1, %c0_2], %0 {strides = array<i32>} : memref<8x128xf32, #tpu.memory_space<vmem>>, vector<8x128xf32>,
    return
  }
  func.func @transform_0(%arg0: i32) -> (i32, i32) {
    %c0_i32 = arith.constant 0 : i32
    %c0_i32_0 = arith.constant 0 : i32
    %c0_i32_1 = arith.constant 0 : i32
    return %c0_i32, %c0_i32_0 : i32, i32
  }
  func.func @transform_1(%arg0: i32) -> (i32, i32) {
    %c0_i32 = arith.constant 0 : i32
    %c0_i32_0 = arith.constant 0 : i32
    %c0_i32_1 = arith.constant 0 : i32
    return %c0_i32, %c0_i32_0 : i32, i32
  }
}

module attributes {stable_mosaic.version = 11 : i64} {
  func.func @_ffn_kernel(%arg0: i32, %arg1: memref<16x128xf32, #tpu.memory_space<vmem>>, %arg2: memref<128x256xf32, #tpu.memory_space<vmem>>, %arg3: memref<1x256xf32, #tpu.memory_space<vmem>>, %arg4: memref<256x128xf32, #tpu.memory_space<vmem>>, %arg5: memref<3x128xf32, #tpu.memory_space<vmem>>, %arg6: memref<16x128xf32, #tpu.memory_space<vmem>>) attributes {dimension_semantics = [#tpu.dimension_semantics<parallel>], iteration_bounds = array<i64: 2>, scalar_prefetch = 0 : i64, scratch_operands = 0 : i64, tpu.core_type = #tpu.core_type<tc>, window_params = [{transform_indices = @transform_0, window_bounds = array<i64: 16, 128>}, {pipeline_mode = #tpu.pipeline_mode<synchronous>, transform_indices = @transform_1, window_bounds = array<i64: 128, 256>}, {pipeline_mode = #tpu.pipeline_mode<synchronous>, transform_indices = @transform_2, window_bounds = array<i64: 1, 256>}, {pipeline_mode = #tpu.pipeline_mode<synchronous>, transform_indices = @transform_3, window_bounds = array<i64: 256, 128>}, {pipeline_mode = #tpu.pipeline_mode<synchronous>, transform_indices = @transform_4, window_bounds = array<i64: 3, 128>}, {transform_indices = @transform_5, window_bounds = array<i64: 16, 128>}]} {
    %c0 = arith.constant 0 : index
    %c0_0 = arith.constant 0 : index
    %0 = vector.load %arg1[%c0, %c0_0] : memref<16x128xf32, #tpu.memory_space<vmem>>, vector<16x128xf32>
    %c0_1 = arith.constant 0 : index
    %c0_2 = arith.constant 0 : index
    %1 = vector.load %arg2[%c0_1, %c0_2] : memref<128x256xf32, #tpu.memory_space<vmem>>, vector<128x256xf32>
    %cst = arith.constant dense<0.000000e+00> : vector<16x256xf32>
    %2 = tpu.matmul %0, %1, %cst {dimension_numbers = #tpu.dot_dimension_numbers<[1], [0], [0], [1], [0, 0, 1, 1], [], []>} : vector<16x128xf32>, vector<128x256xf32>, vector<16x256xf32> -> vector<16x256xf32>
    %c0_3 = arith.constant 0 : index
    %c0_4 = arith.constant 0 : index
    %3 = vector.load %arg3[%c0_3, %c0_4] : memref<1x256xf32, #tpu.memory_space<vmem>>, vector<1x256xf32>
    %4 = vector.broadcast %3 : vector<1x256xf32> to vector<16x256xf32>
    %5 = arith.addf %2, %4 : vector<16x256xf32>
    %cst_5 = arith.constant 0.000000e+00 : f32
    %6 = vector.broadcast %cst_5 : f32 to vector<16x256xf32>
    %7 = arith.maximumf %5, %6 : vector<16x256xf32>
    %c0_6 = arith.constant 0 : index
    %c0_7 = arith.constant 0 : index
    %8 = vector.load %arg4[%c0_6, %c0_7] : memref<256x128xf32, #tpu.memory_space<vmem>>, vector<256x128xf32>
    %cst_8 = arith.constant dense<0.000000e+00> : vector<16x128xf32>
    %9 = tpu.matmul %7, %8, %cst_8 {dimension_numbers = #tpu.dot_dimension_numbers<[1], [0], [0], [1], [0, 0, 1, 1], [], []>} : vector<16x256xf32>, vector<256x128xf32>, vector<16x128xf32> -> vector<16x128xf32>
    %10 = arith.addf %0, %9 : vector<16x128xf32>
    %c0_9 = arith.constant 0 : index
    %c0_10 = arith.constant 0 : index
    %11 = vector.load %arg5[%c0_9, %c0_10] : memref<3x128xf32, #tpu.memory_space<vmem>>, vector<1x128xf32>
    %12 = vector.broadcast %11 : vector<1x128xf32> to vector<16x128xf32>
    %13 = arith.addf %10, %12 : vector<16x128xf32>
    %cst_11 = arith.constant dense<0.000000e+00> : vector<16xf32>
    %14 = vector.multi_reduction <add>, %13, %cst_11 [1] : vector<16x128xf32> to vector<16xf32>
    %15 = vector.shape_cast %14 : vector<16xf32> to vector<16x1xf32>
    %cst_12 = arith.constant 1.280000e+02 : f32
    %16 = vector.broadcast %cst_12 : f32 to vector<16x1xf32>
    %17 = arith.divf %15, %16 : vector<16x1xf32>
    %18 = vector.broadcast %17 : vector<16x1xf32> to vector<16x128xf32>
    %19 = arith.subf %13, %18 : vector<16x128xf32>
    %20 = arith.mulf %19, %19 : vector<16x128xf32>
    %cst_13 = arith.constant dense<0.000000e+00> : vector<16xf32>
    %21 = vector.multi_reduction <add>, %20, %cst_13 [1] : vector<16x128xf32> to vector<16xf32>
    %22 = vector.shape_cast %21 : vector<16xf32> to vector<16x1xf32>
    %cst_14 = arith.constant 1.280000e+02 : f32
    %23 = vector.broadcast %cst_14 : f32 to vector<16x1xf32>
    %24 = arith.divf %22, %23 : vector<16x1xf32>
    %cst_15 = arith.constant 9.99999974E-6 : f32
    %25 = vector.broadcast %cst_15 : f32 to vector<16x1xf32>
    %26 = arith.addf %24, %25 : vector<16x1xf32>
    %27 = math.rsqrt %26 : vector<16x1xf32>
    %28 = vector.broadcast %27 : vector<16x1xf32> to vector<16x128xf32>
    %29 = arith.mulf %19, %28 : vector<16x128xf32>
    %c1 = arith.constant 1 : index
    %c0_16 = arith.constant 0 : index
    %30 = vector.load %arg5[%c1, %c0_16] : memref<3x128xf32, #tpu.memory_space<vmem>>, vector<1x128xf32>
    %31 = vector.broadcast %30 : vector<1x128xf32> to vector<16x128xf32>
    %32 = arith.mulf %29, %31 : vector<16x128xf32>
    %c2 = arith.constant 2 : index
    %c0_17 = arith.constant 0 : index
    %33 = vector.load %arg5[%c2, %c0_17] : memref<3x128xf32, #tpu.memory_space<vmem>>, vector<1x128xf32>
    %34 = vector.broadcast %33 : vector<1x128xf32> to vector<16x128xf32>
    %35 = arith.addf %32, %34 : vector<16x128xf32>
    %c0_18 = arith.constant 0 : index
    %c0_19 = arith.constant 0 : index
    %36 = vector.load %arg6[%c0_18, %c0_19] : memref<16x128xf32, #tpu.memory_space<vmem>>, vector<16x128xf32>
    tpu.vector_store %arg6[%c0_18, %c0_19], %35 {strides = array<i32>} : memref<16x128xf32, #tpu.memory_space<vmem>>, vector<16x128xf32>,
    return
  }
  func.func @transform_0(%arg0: i32) -> (i32, i32) {
    %c0_i32 = arith.constant 0 : i32
    %c0_i32_0 = arith.constant 0 : i32
    return %arg0, %c0_i32 : i32, i32
  }
  func.func @transform_1(%arg0: i32) -> (i32, i32) {
    %c0_i32 = arith.constant 0 : i32
    %c0_i32_0 = arith.constant 0 : i32
    %c0_i32_1 = arith.constant 0 : i32
    return %c0_i32, %c0_i32_0 : i32, i32
  }
  func.func @transform_2(%arg0: i32) -> (i32, i32) {
    %c0_i32 = arith.constant 0 : i32
    %c0_i32_0 = arith.constant 0 : i32
    %c0_i32_1 = arith.constant 0 : i32
    return %c0_i32, %c0_i32_0 : i32, i32
  }
  func.func @transform_3(%arg0: i32) -> (i32, i32) {
    %c0_i32 = arith.constant 0 : i32
    %c0_i32_0 = arith.constant 0 : i32
    %c0_i32_1 = arith.constant 0 : i32
    return %c0_i32, %c0_i32_0 : i32, i32
  }
  func.func @transform_4(%arg0: i32) -> (i32, i32) {
    %c0_i32 = arith.constant 0 : i32
    %c0_i32_0 = arith.constant 0 : i32
    %c0_i32_1 = arith.constant 0 : i32
    return %c0_i32, %c0_i32_0 : i32, i32
  }
  func.func @transform_5(%arg0: i32) -> (i32, i32) {
    %c0_i32 = arith.constant 0 : i32
    %c0_i32_0 = arith.constant 0 : i32
    return %arg0, %c0_i32 : i32, i32
  }
}

</mosaic_0001>

<llo_original>
// kernel: tpu_custom_call.1
$region0: #{tpu_custom_call.1}
  #allocation0 [shape = 'u32[]', space=smem, size = 0x4, offset = 0x4, fixed_abs, tag = 'smem constant byte address 0x4 - core index']
  #allocation1 [shape = 'u32[144,128]{1,0:T(1,128)}', space=vmem, size = 0x12000, scoped, tag = 'internal scratch']
  %s0 = inlined_call_operand.hbm [shape: f32[8,128], index: 0, kind: input, shape index: {}]
  %s1 = inlined_call_operand.hbm [shape: f32[8,128], index: 1, kind: output, shape index: {}]
  %s2 = sld [smem:[#allocation0]]
  $region18: #{tpu_custom_call.1} parent=0
    _
  %s4 = ssub.s32 1, %s2
  %s5 = scalar_select 0, %s4, %s2
  $region1: #{tpu_custom_call.1} parent=0
    #allocation2 [shape = 'u8[4096]{0}', space=vmem, size = 0x1000, scoped, tag = 'input window, operand 0, single buffered']
    #allocation3 [shape = 's32[1]{0}', space=sflag, size = 0x4, scoped, tag = 'scoped memory for tpu_custom_call.1']
    #allocation4 [shape = 's32[1]{0}', space=sflag, size = 0x4, scoped, tag = 'scoped memory for tpu_custom_call.1']
    #allocation5 [shape = 'u8[4096]{0}', space=vmem, size = 0x1000, scoped, tag = 'output window, operand 0, single buffered']
    %6 = vsyncpa [#allocation3], 0
    %7 = vsyncpa [#allocation4], 0
    // Predicated region
    $region2: #{tpu_custom_call.1} parent=1 // pred_check
      _
    $region3: #{tpu_custom_call.1} parent=1 // pred_check_branch
      %9 = sbr.rel (0) target = $region5
    $region4: #{tpu_custom_call.1} parent=1 // pred_region
      %s11 = ssub.s32 128, 128
      %12 = vsyncadd [#allocation3], %s11
      %s14 = sshll.u32 [#allocation2], 4
      %s15 = int_to_ptr.vmem [resolvable:$true] %s14
      %17 = dma.hbm_to_vmem [thread:$0]  %s0, 128, %s15, [#allocation3]
    $region5: #{tpu_custom_call.1} parent=1 // pred_fallthru
      _
    // Predicated region
    $region6: #{tpu_custom_call.1} parent=1 // pred_check
      _
    $region7: #{tpu_custom_call.1} parent=1 // pred_check_branch
      %19 = sbr.rel (0) target = $region9
    $region8: #{tpu_custom_call.1} parent=1 // pred_region
      %20 = dma.done [#allocation3], 128
    $region9: #{tpu_custom_call.1} parent=1 // pred_fallthru
      _
    %v21 = vld [vmem:[#allocation2] sm:$0xff]
    %22 = vst [vmem:[#allocation5] sm:$0xff] %v21
    // Predicated region
    $region10: #{tpu_custom_call.1} parent=1 // pred_check
      _
    $region11: #{tpu_custom_call.1} parent=1 // pred_check_branch
      %24 = sbr.rel (0) target = $region13
    $region12: #{tpu_custom_call.1} parent=1 // pred_region
      %s26 = ssub.s32 128, 128
      %27 = vsyncadd [#allocation4], %s26
      %s29 = sshll.u32 [#allocation5], 4
      %s30 = int_to_ptr.vmem [resolvable:$true] %s29
      %32 = dma.vmem_to_hbm [thread:$0]  %s30, 128, %s1, [#allocation4]
    $region13: #{tpu_custom_call.1} parent=1 // pred_fallthru
      _
    // Predicated region
    $region14: #{tpu_custom_call.1} parent=1 // pred_check
      _
    $region15: #{tpu_custom_call.1} parent=1 // pred_check_branch
      %34 = sbr.rel (0) target = $region17
    $region16: #{tpu_custom_call.1} parent=1 // pred_region
      %35 = dma.done [#allocation4], 128
    $region17: #{tpu_custom_call.1} parent=1 // pred_fallthru
      _
    %36 = vsyncpa [#allocation3], 1
    %37 = vsyncpa [#allocation4], 1

// kernel: tpu_custom_call.1
$region0: #{tpu_custom_call.1}
  #allocation0 [shape = 'u32[]', space=smem, size = 0x4, offset = 0x4, fixed_abs, tag = 'smem constant byte address 0x4 - core index']
  #allocation1 [shape = 'u32[144,128]{1,0:T(1,128)}', space=vmem, size = 0x12000, scoped, tag = 'internal scratch']
  %s0 = inlined_call_operand.hbm [shape: f32[32,128], index: 0, kind: input, shape index: {}]
  %s1 = inlined_call_operand.hbm [shape: f32[128,256], index: 1, kind: input, shape index: {}]
  %s2 = inlined_call_operand.vmem [shape: f32[1,256], index: 2, kind: input, shape index: {}]
  %s3 = inlined_call_operand.hbm [shape: f32[256,128], index: 3, kind: input, shape index: {}]
  %s4 = inlined_call_operand.vmem [shape: f32[3,128], index: 4, kind: input, shape index: {}]
  %s5 = inlined_call_operand.hbm [shape: f32[32,128], index: 5, kind: output, shape index: {}]
  %s6 = sld [smem:[#allocation0]]
  $region65: #{tpu_custom_call.1} parent=0
    _
  %s8 = ssub.s32 1, %s6
  %s9 = scalar_select 0, %s8, %s6
  $region1: #{tpu_custom_call.1} parent=0
    #allocation2 [shape = 'u8[16384]{0}', space=vmem, size = 0x4000, scoped, tag = 'input window, operand 0']
    #allocation3 [shape = 's32[2]{0}', space=sflag, size = 0x8, scoped, tag = 'scoped memory for tpu_custom_call.1']
    #allocation4 [shape = 's32[2]{0}', space=sflag, size = 0x8, scoped, tag = 'scoped memory for tpu_custom_call.1']
    #allocation5 [shape = 'u8[131072]{0}', space=vmem, size = 0x20000, scoped, tag = 'input window, operand 1, single buffered']
    #allocation6 [shape = 's32[1]{0}', space=sflag, size = 0x4, scoped, tag = 'scoped memory for tpu_custom_call.1']
    #allocation7 [shape = 'u8[131072]{0}', space=vmem, size = 0x20000, scoped, tag = 'input window, operand 3, single buffered']
    #allocation8 [shape = 'u8[16384]{0}', space=vmem, size = 0x4000, scoped, tag = 'output window, operand 0']
    %10 = vsyncpa [#allocation3], 0
    %s11 = scalar_lea.sflag [#allocation3], 1
    %12 = vsyncpa %s11, 0
    %13 = vsyncpa [#allocation6], 0
    %14 = vsyncpa [#allocation4], 0
    %s15 = scalar_lea.sflag [#allocation4], 1
    %16 = vsyncpa %s15, 0
    loop: start=0, step=1, limit=4
    $region2: #{tpu_custom_call.1} parent=1 // loop_pre_header
      _
    $region3: #{tpu_custom_call.1} parent=1 // loop_header
      %s18 = sphi 0, %s22
      %p19 = scmp.ge.s32.totalorder %s18, 4
      %s28 = sphi 0, %s30
      %s31 = sphi 0, %s28
      %s32 = sphi 0, %s31
      %s48 = sphi 0, %s32
      %s52 = sphi 0, %s52
      %s54 = sphi 0, %s52
      %s55 = sphi 0, %s54
      %s69 = sphi 0, %s55
      %s73 = sphi 0, %s73
      %s75 = sphi 0, %s73
      %s76 = sphi 0, %s75
      %s90 = sphi 0, %s76
      %s94 = sphi 0, %s94
      %s96 = sphi 0, %s94
      %s97 = sphi 0, %s96
      %s111 = sphi 0, %s97
      %s115 = sphi 0, %s115
      %s117 = sphi 0, %s115
      %s118 = sphi 0, %s117
      %s132 = sphi 0, %s118
      %s138 = sphi 0, %s140
      %s141 = sphi 0, %s138
      %s142 = sphi 0, %s141
      %s158 = sphi 0, %s142
    $region4: #{tpu_custom_call.1} parent=1 // loop_header_branch
      %21 = sbr.rel (%p19) target = $region8
    $region5: #{tpu_custom_call.1} parent=1 // loop_body
      %s23 = ssub.s32 %s18, 1
      %s24 = ssub.s32 %s18, 2
      %s25 = sadd.s32 %s18, 1
      %s26 = ssub.s32 %s18, %s25
      %p27 = scmp.eq.s32.totalorder %s26, 0
      %s29 = sadd.s32 %s28, 1
      %s30 = scalar_select %p27, %s28, %s29
      %p33 = pneg %p27
      %p34 = scmp.eq.s32.totalorder %s18, 1
      %p35 = por %p33, %p34
      %p36 = scmp.ne.s32.totalorder %s28, %s31
      %p37 = scmp.eq.s32.totalorder %s18, 0
      %p38 = por %p36, %p37
      %p39 = scmp.ne.s32.totalorder %s28, %s31
      %p40 = scmp.eq.s32.totalorder %s23, 1
      %p41 = por %p39, %p40
      %p42 = scmp.ne.s32.totalorder %s31, %s32
      %p43 = scmp.eq.s32.totalorder %s23, 0
      %p44 = por %p42, %p43
      %p45 = scmp.ne.s32.totalorder %s31, %s32
      %p46 = scmp.eq.s32.totalorder %s24, 1
      %p47 = por %p45, %p46
      %p49 = scmp.ne.s32.totalorder %s32, %s48
      %p50 = scmp.eq.s32.totalorder %s24, 0
      %p51 = por %p49, %p50
      %s53 = sadd.s32 %s52, 1
      %p56 = scmp.eq.s32.totalorder %s18, 1
      %p57 = scmp.ne.s32.totalorder %s52, %s54
      %p58 = scmp.eq.s32.totalorder %s18, 0
      %p59 = por %p57, %p58
      %p60 = scmp.ne.s32.totalorder %s52, %s54
      %p61 = scmp.eq.s32.totalorder %s23, 1
      %p62 = por %p60, %p61
      %p63 = scmp.ne.s32.totalorder %s54, %s55
      %p64 = scmp.eq.s32.totalorder %s23, 0
      %p65 = por %p63, %p64
      %p66 = scmp.ne.s32.totalorder %s54, %s55
      %p67 = scmp.eq.s32.totalorder %s24, 1
      %p68 = por %p66, %p67
      %p70 = scmp.ne.s32.totalorder %s55, %s69
      %p71 = scmp.eq.s32.totalorder %s24, 0
      %p72 = por %p70, %p71
      %s74 = sadd.s32 %s73, 1
      %p77 = scmp.eq.s32.totalorder %s18, 1
      %p78 = scmp.ne.s32.totalorder %s73, %s75
      %p79 = scmp.eq.s32.totalorder %s18, 0
      %p80 = por %p78, %p79
      %p81 = scmp.ne.s32.totalorder %s73, %s75
      %p82 = scmp.eq.s32.totalorder %s23, 1
      %p83 = por %p81, %p82
      %p84 = scmp.ne.s32.totalorder %s75, %s76
      %p85 = scmp.eq.s32.totalorder %s23, 0
      %p86 = por %p84, %p85
      %p87 = scmp.ne.s32.totalorder %s75, %s76
      %p88 = scmp.eq.s32.totalorder %s24, 1
      %p89 = por %p87, %p88
      %p91 = scmp.ne.s32.totalorder %s76, %s90
      %p92 = scmp.eq.s32.totalorder %s24, 0
      %p93 = por %p91, %p92
      %s95 = sadd.s32 %s94, 1
      %p98 = scmp.eq.s32.totalorder %s18, 1
      %p99 = scmp.ne.s32.totalorder %s94, %s96
      %p100 = scmp.eq.s32.totalorder %s18, 0
      %p101 = por %p99, %p100
      %p102 = scmp.ne.s32.totalorder %s94, %s96
      %p103 = scmp.eq.s32.totalorder %s23, 1
      %p104 = por %p102, %p103
      %p105 = scmp.ne.s32.totalorder %s96, %s97
      %p106 = scmp.eq.s32.totalorder %s23, 0
      %p107 = por %p105, %p106
      %p108 = scmp.ne.s32.totalorder %s96, %s97
      %p109 = scmp.eq.s32.totalorder %s24, 1
      %p110 = por %p108, %p109
      %p112 = scmp.ne.s32.totalorder %s97, %s111
      %p113 = scmp.eq.s32.totalorder %s24, 0
      %p114 = por %p112, %p113
      %s116 = sadd.s32 %s115, 1
      %p119 = scmp.eq.s32.totalorder %s18, 1
      %p120 = scmp.ne.s32.totalorder %s115, %s117
      %p121 = scmp.eq.s32.totalorder %s18, 0
      %p122 = por %p120, %p121
      %p123 = scmp.ne.s32.totalorder %s115, %s117
      %p124 = scmp.eq.s32.totalorder %s23, 1
      %p125 = por %p123, %p124
      %p126 = scmp.ne.s32.totalorder %s117, %s118
      %p127 = scmp.eq.s32.totalorder %s23, 0
      %p128 = por %p126, %p127
      %p129 = scmp.ne.s32.totalorder %s117, %s118
      %p130 = scmp.eq.s32.totalorder %s24, 1
      %p131 = por %p129, %p130
      %p133 = scmp.ne.s32.totalorder %s118, %s132
      %p134 = scmp.eq.s32.totalorder %s24, 0
      %p135 = por %p133, %p134
      %s136 = ssub.s32 %s18, %s25
      %p137 = scmp.eq.s32.totalorder %s136, 0
      %s139 = sadd.s32 %s138, 1
      %s140 = scalar_select %p137, %s138, %s139
      %p143 = pneg %p137
      %p144 = scmp.eq.s32.totalorder %s18, 1
      %p145 = por %p143, %p144
      %p146 = scmp.ne.s32.totalorder %s138, %s141
      %p147 = scmp.eq.s32.totalorder %s18, 0
      %p148 = por %p146, %p147
      %p149 = scmp.ne.s32.totalorder %s138, %s141
      %p150 = scmp.eq.s32.totalorder %s23, 1
      %p151 = por %p149, %p150
      %p152 = scmp.ne.s32.totalorder %s141, %s142
      %p153 = scmp.eq.s32.totalorder %s23, 0
      %p154 = por %p152, %p153
      %p155 = scmp.ne.s32.totalorder %s141, %s142
      %p156 = scmp.eq.s32.totalorder %s24, 1
      %p157 = por %p155, %p156
      %p159 = scmp.ne.s32.totalorder %s142, %s158
      %p160 = scmp.eq.s32.totalorder %s24, 0
      %p161 = por %p159, %p160
      %p162 = scmp.le.s32.totalorder 1, %s18
      %p163 = scmp.lt.s32.totalorder %s18, 3
      %p164 = pnand %p162, %p163
      %p165 = pneg %p164
      // Predicated region
      $region9: #{tpu_custom_call.1} parent=5 // pred_check
        _
      $region10: #{tpu_custom_call.1} parent=5 // pred_check_branch
        %167 = sbr.rel (%p164) target = $region12
      $region11: #{tpu_custom_call.1} parent=5 // pred_region
        %s168 = ssub.s32 %s18, 1
        // Predicated region
        $region13: #{tpu_custom_call.1} parent=11 // pred_check
          %p169 = pneg %p65
        $region14: #{tpu_custom_call.1} parent=11 // pred_check_branch
          %171 = sbr.rel (%p169) target = $region16
        $region15: #{tpu_custom_call.1} parent=11 // pred_region
          %s173 = ssub.s32 4096, 4096
          %174 = vsyncadd [#allocation6], %s173
          %s175 = sshll.u32 [#allocation5], 4
          %s176 = int_to_ptr.vmem [resolvable:$true] %s175
          %181 = dma.hbm_to_vmem [thread:$0]  %s1, 4096, %s176, [#allocation6], 256, 256, 16
        $region16: #{tpu_custom_call.1} parent=11 // pred_fallthru
          _
        // Predicated region
        $region17: #{tpu_custom_call.1} parent=11 // pred_check
          %p182 = pneg %p86
        $region18: #{tpu_custom_call.1} parent=11 // pred_check_branch
          %184 = sbr.rel (%p182) target = $region20
        $region19: #{tpu_custom_call.1} parent=11 // pred_region
          _
        $region20: #{tpu_custom_call.1} parent=11 // pred_fallthru
          _
        // Predicated region
        $region21: #{tpu_custom_call.1} parent=11 // pred_check
          %p185 = pneg %p107
        $region22: #{tpu_custom_call.1} parent=11 // pred_check_branch
          %187 = sbr.rel (%p185) target = $region24
        $region23: #{tpu_custom_call.1} parent=11 // pred_region
          %s189 = ssub.s32 4096, 4096
          %190 = vsyncadd [#allocation6], %s189
          %s191 = sshll.u32 [#allocation7], 4
          %s192 = int_to_ptr.vmem [resolvable:$true] %s191
          %197 = dma.hbm_to_vmem [thread:$0]  %s3, 4096, %s192, [#allocation6], 128, 128, 8
        $region24: #{tpu_custom_call.1} parent=11 // pred_fallthru
          _
        // Predicated region
        $region25: #{tpu_custom_call.1} parent=11 // pred_check
          %p198 = pneg %p128
        $region26: #{tpu_custom_call.1} parent=11 // pred_check_branch
          %200 = sbr.rel (%p198) target = $region28
        $region27: #{tpu_custom_call.1} parent=11 // pred_region
          _
        $region28: #{tpu_custom_call.1} parent=11 // pred_fallthru
          _
      $region12: #{tpu_custom_call.1} parent=5 // pred_fallthru
        _
      %p201 = scmp.lt.s32.totalorder %s18, 2
      // Predicated region
      $region29: #{tpu_custom_call.1} parent=5 // pred_check
        %p202 = pneg %p201
      $region30: #{tpu_custom_call.1} parent=5 // pred_check_branch
        %204 = sbr.rel (%p202) target = $region32
      $region31: #{tpu_custom_call.1} parent=5 // pred_region
        // Predicated region
        $region33: #{tpu_custom_call.1} parent=31 // pred_check
          %p205 = pneg %p38
        $region34: #{tpu_custom_call.1} parent=31 // pred_check_branch
          %207 = sbr.rel (%p205) target = $region36
        $region35: #{tpu_custom_call.1} parent=31 // pred_region
          %s208 = sand.u32 %s28, 1
          %s209 = scalar_lea.sflag [#allocation3], %s208
          %s210 = sand.u32 %s28, 1
          %s211 = smul.addr %s210, 16
          %s212 = scalar_lea.vmem [#allocation2], %s211
          %s213 = smul.u32 2, %s18
          %s215 = ssub.s32 256, 256
          %216 = vsyncadd %s209, %s215
          %s217 = smul.addr %s213, 128
          %s218 = scalar_lea.hbm %s0, %s217
          %s219 = sshll.u32 %s212, 4
          %s220 = int_to_ptr.vmem [resolvable:$true] %s219
          %225 = dma.hbm_to_vmem [thread:$0]  %s218, 256, %s220, %s209, 128, 128, 8
        $region36: #{tpu_custom_call.1} parent=31 // pred_fallthru
          _
      $region32: #{tpu_custom_call.1} parent=5 // pred_fallthru
        _
      %p226 = scmp.le.s32.totalorder 1, %s18
      %p227 = scmp.lt.s32.totalorder %s18, 3
      %p228 = pnand %p226, %p227
      %p229 = pneg %p228
      // Predicated region
      $region37: #{tpu_custom_call.1} parent=5 // pred_check
        _
      $region38: #{tpu_custom_call.1} parent=5 // pred_check_branch
        %231 = sbr.rel (%p228) target = $region40
      $region39: #{tpu_custom_call.1} parent=5 // pred_region
        %s232 = ssub.s32 %s18, 1
        %s233 = sand.u32 %s31, 1
        %s234 = scalar_lea.sflag [#allocation3], %s233
        %s235 = sand.u32 %s31, 1
        %s236 = smul.addr %s235, 16
        %s237 = scalar_lea.vmem [#allocation2], %s236
        // Predicated region
        $region41: #{tpu_custom_call.1} parent=39 // pred_check
          %p238 = pneg %p44
        $region42: #{tpu_custom_call.1} parent=39 // pred_check_branch
          %240 = sbr.rel (%p238) target = $region44
        $region43: #{tpu_custom_call.1} parent=39 // pred_region
          %241 = dma.done %s234, 256
        $region44: #{tpu_custom_call.1} parent=39 // pred_fallthru
          _
        // Predicated region
        $region45: #{tpu_custom_call.1} parent=39 // pred_check
          %p242 = pneg %p65
        $region46: #{tpu_custom_call.1} parent=39 // pred_check_branch
          %244 = sbr.rel (%p242) target = $region48
        $region47: #{tpu_custom_call.1} parent=39 // pred_region
          %245 = dma.done [#allocation6], 4096
        $region48: #{tpu_custom_call.1} parent=39 // pred_fallthru
          _
        // Predicated region
        $region49: #{tpu_custom_call.1} parent=39 // pred_check
          %p246 = pneg %p107
        $region50: #{tpu_custom_call.1} parent=39 // pred_check_branch
          %248 = sbr.rel (%p246) target = $region52
        $region51: #{tpu_custom_call.1} parent=39 // pred_region
          %249 = dma.done [#allocation6], 4096
        $region52: #{tpu_custom_call.1} parent=39 // pred_fallthru
          _
        %s250 = sand.u32 %s31, 1
        %s251 = scalar_lea.sflag [#allocation3], %s250
        %s252 = sand.u32 %s31, 1
        %s253 = smul.addr %s252, 16
        %s254 = scalar_lea.vmem [#allocation2], %s253
        %p255 = pneg %p44
        %p256 = pneg %p41
        %p257 = pneg %p65
        %p258 = pneg %p62
        %p259 = pneg %p86
        %p260 = pneg %p83
        %p261 = pneg %p107
        %p262 = pneg %p104
        %p263 = pneg %p128
        %p264 = pneg %p125
        %p265 = pneg %p154
        %p266 = pneg %p151
        %s267 = sand.u32 %s141, 1
        %s268 = scalar_lea.sflag [#allocation4], %s267
        %s269 = sand.u32 %s141, 1
        %s270 = smul.addr %s269, 16
        %s271 = scalar_lea.vmem [#allocation8], %s270
        %s272 = smul.u32 2, %s23
        %s273 = smul.u32 2, %s23
        %v274 = vld [vmem:[%s237] sm:$0xff]
        %v275 = vld [vmem:[%s237 + $0x8] sm:$0xff]
        %v276 = vld [vmem:[#allocation5] sm:$0xff]
        %v277 = vld [vmem:[#allocation5 + $0x8] sm:$0xff]
        %v278 = vld [vmem:[#allocation5 + $0x10] sm:$0xff]
        %v279 = vld [vmem:[#allocation5 + $0x18] sm:$0xff]
        %v280 = vld [vmem:[#allocation5 + $0x20] sm:$0xff]
        %v281 = vld [vmem:[#allocation5 + $0x28] sm:$0xff]
        %v282 = vld [vmem:[#allocation5 + $0x30] sm:$0xff]
        %v283 = vld [vmem:[#allocation5 + $0x38] sm:$0xff]
        %v284 = vld [vmem:[#allocation5 + $0x40] sm:$0xff]
        %v285 = vld [vmem:[#allocation5 + $0x48] sm:$0xff]
        %v286 = vld [vmem:[#allocation5 + $0x50] sm:$0xff]
        %v287 = vld [vmem:[#allocation5 + $0x58] sm:$0xff]
        %v288 = vld [vmem:[#allocation5 + $0x60] sm:$0xff]
        %v289 = vld [vmem:[#allocation5 + $0x68] sm:$0xff]
        %v290 = vld [vmem:[#allocation5 + $0x70] sm:$0xff]
        %v291 = vld [vmem:[#allocation5 + $0x78] sm:$0xff]
        %v292 = vld [vmem:[#allocation5 + $0x80] sm:$0xff]
        %v293 = vld [vmem:[#allocation5 + $0x88] sm:$0xff]
        %v294 = vld [vmem:[#allocation5 + $0x90] sm:$0xff]
        %v295 = vld [vmem:[#allocation5 + $0x98] sm:$0xff]
        %v296 = vld [vmem:[#allocation5 + $0xa0] sm:$0xff]
        %v297 = vld [vmem:[#allocation5 + $0xa8] sm:$0xff]
        %v298 = vld [vmem:[#allocation5 + $0xb0] sm:$0xff]
        %v299 = vld [vmem:[#allocation5 + $0xb8] sm:$0xff]
        %v300 = vld [vmem:[#allocation5 + $0xc0] sm:$0xff]
        %v301 = vld [vmem:[#allocation5 + $0xc8] sm:$0xff]
        %v302 = vld [vmem:[#allocation5 + $0xd0] sm:$0xff]
        %v303 = vld [vmem:[#allocation5 + $0xd8] sm:$0xff]
        %v304 = vld [vmem:[#allocation5 + $0xe0] sm:$0xff]
        %v305 = vld [vmem:[#allocation5 + $0xe8] sm:$0xff]
        %v306 = vld [vmem:[#allocation5 + $0xf0] sm:$0xff]
        %v307 = vld [vmem:[#allocation5 + $0xf8] sm:$0xff]
        %v308 = vld [vmem:[%s2] sm:$0x3]
        %v310 = vlaneseq
        %v311 = vshrl.u32 %v310, 7
        %v312 = vsub.s32 0, %v311
        %v313 = vrot.slane %v308, %v312
        %v314 = vlaneseq
        %v315 = vshrl.u32 %v314, 7
        %v316 = vsub.s32 1, %v315
        %v317 = vrot.slane %v308, %v316
        %320 = vmatprep.subr.mxu0 %v307
        %321 = vmatpush1.msra.mxu0 %v306
        %322 = vmatprep.subr.mxu0 %v305
        %323 = vmatpush1.msra.mxu0 %v304
        %324 = vmatprep.subr.mxu0 %v303
        %325 = vmatpush1.msra.mxu0 %v302
        %326 = vmatprep.subr.mxu0 %v301
        %327 = vmatpush1.msra.mxu0 %v300
        %328 = vmatprep.subr.mxu0 %v299
        %329 = vmatpush1.msra.mxu0 %v298
        %330 = vmatprep.subr.mxu0 %v297
        %331 = vmatpush1.msra.mxu0 %v296
        %332 = vmatprep.subr.mxu0 %v295
        %333 = vmatpush1.msra.mxu0 %v294
        %334 = vmatprep.subr.mxu0 %v293
        %335 = vmatpush1.msra.mxu0 %v292
        %336 = vmatprep.subr.mxu0 %v291
        %337 = vmatpush1.msra.mxu0 %v290
        %338 = vmatprep.subr.mxu0 %v289
        %339 = vmatpush1.msra.mxu0 %v288
        %340 = vmatprep.subr.mxu0 %v287
        %341 = vmatpush1.msra.mxu0 %v286
        %342 = vmatprep.subr.mxu0 %v285
        %343 = vmatpush1.msra.mxu0 %v284
        %344 = vmatprep.subr.mxu0 %v283
        %345 = vmatpush1.msra.mxu0 %v282
        %346 = vmatprep.subr.mxu0 %v281
        %347 = vmatpush1.msra.mxu0 %v280
        %348 = vmatprep.subr.mxu0 %v279
        %349 = vmatpush1.msra.mxu0 %v278
        %350 = vmatprep.subr.mxu0 %v277
        %351 = vmatpush1.msra.mxu0 %v276
        %352 = vmatprep.subr.mxu0 0.0
        %353 = vmatpush2.msra.mxu0 0.0
        %354 = vmatprep.subr.mxu0 0.0
        %355 = vmatpush2.msra.mxu0 0.0
        %356 = vmatprep.subr.mxu0 0.0
        %357 = vmatpush2.msra.mxu0 0.0
        %358 = vmatprep.subr.mxu0 0.0
        %359 = vmatpush2.msra.mxu0 0.0
        %360 = vmatprep.subr.mxu0 0.0
        %361 = vmatpush2.msra.mxu0 0.0
        %362 = vmatprep.subr.mxu0 0.0
        %363 = vmatpush2.msra.mxu0 0.0
        %364 = vmatprep.subr.mxu0 0.0
        %365 = vmatpush2.msra.mxu0 0.0
        %366 = vmatprep.subr.mxu0 0.0
        %367 = vmatpush2.msra.mxu0 0.0
        %368 = vmatprep.subr.mxu0 0.0
        %369 = vmatpush2.msra.mxu0 0.0
        %370 = vmatprep.subr.mxu0 0.0
        %371 = vmatpush2.msra.mxu0 0.0
        %372 = vmatprep.subr.mxu0 0.0
        %373 = vmatpush2.msra.mxu0 0.0
        %374 = vmatprep.subr.mxu0 0.0
        %375 = vmatpush2.msra.mxu0 0.0
        %376 = vmatprep.subr.mxu0 0.0
        %377 = vmatpush2.msra.mxu0 0.0
        %378 = vmatprep.subr.mxu0 0.0
        %379 = vmatpush2.msra.mxu0 0.0
        %380 = vmatprep.subr.mxu0 0.0
        %381 = vmatpush2.msra.mxu0 0.0
        %382 = vmatprep.subr.mxu0 0.0
        %383 = vmatpush2.msra.mxu0 0.0
        %384 = vmatprep.mubr.f32.mxu0 0.0
        %385 = vmatmul.mubr.f32.gmra.mxu0 %v274
        %v386 = vpop.f32.mrf.mxu0
        %v387 = vadd.f32 %v313, %v386
        %v388 = vpop.f32.mrf.mxu0
        %v389 = vadd.f32 %v317, %v388
        %390 = vmatprep.mubr.f32.mxu0 0.0
        %391 = vmatmul.mubr.f32.gmra.mxu0 %v275
        %v392 = vpop.f32.mrf.mxu0
        %v393 = vadd.f32 %v313, %v392
        %v394 = vpop.f32.mrf.mxu0
        %v395 = vadd.f32 %v317, %v394
        %396 = vdwg.mxu0
        %v397 = vmax.f32 %v387, 0.0
        %v398 = vmax.f32 %v389, 0.0
        %v399 = vmax.f32 %v393, 0.0
        %v400 = vmax.f32 %v395, 0.0
        %v401 = vld [vmem:[#allocation7] sm:$0xff]
        %v402 = vld [vmem:[#allocation7 + $0x8] sm:$0xff]
        %v403 = vld [vmem:[#allocation7 + $0x10] sm:$0xff]
        %v404 = vld [vmem:[#allocation7 + $0x18] sm:$0xff]
        %v405 = vld [vmem:[#allocation7 + $0x20] sm:$0xff]
        %v406 = vld [vmem:[#allocation7 + $0x28] sm:$0xff]
        %v407 = vld [vmem:[#allocation7 + $0x30] sm:$0xff]
        %v408 = vld [vmem:[#allocation7 + $0x38] sm:$0xff]
        %v409 = vld [vmem:[#allocation7 + $0x40] sm:$0xff]
        %v410 = vld [vmem:[#allocation7 + $0x48] sm:$0xff]
        %v411 = vld [vmem:[#allocation7 + $0x50] sm:$0xff]
        %v412 = vld [vmem:[#allocation7 + $0x58] sm:$0xff]
        %v413 = vld [vmem:[#allocation7 + $0x60] sm:$0xff]
        %v414 = vld [vmem:[#allocation7 + $0x68] sm:$0xff]
        %v415 = vld [vmem:[#allocation7 + $0x70] sm:$0xff]
        %v416 = vld [vmem:[#allocation7 + $0x78] sm:$0xff]
        %v417 = vld [vmem:[#allocation7 + $0x80] sm:$0xff]
        %v418 = vld [vmem:[#allocation7 + $0x88] sm:$0xff]
        %v419 = vld [vmem:[#allocation7 + $0x90] sm:$0xff]
        %v420 = vld [vmem:[#allocation7 + $0x98] sm:$0xff]
        %v421 = vld [vmem:[#allocation7 + $0xa0] sm:$0xff]
        %v422 = vld [vmem:[#allocation7 + $0xa8] sm:$0xff]
        %v423 = vld [vmem:[#allocation7 + $0xb0] sm:$0xff]
        %v424 = vld [vmem:[#allocation7 + $0xb8] sm:$0xff]
        %v425 = vld [vmem:[#allocation7 + $0xc0] sm:$0xff]
        %v426 = vld [vmem:[#allocation7 + $0xc8] sm:$0xff]
        %v427 = vld [vmem:[#allocation7 + $0xd0] sm:$0xff]
        %v428 = vld [vmem:[#allocation7 + $0xd8] sm:$0xff]
        %v429 = vld [vmem:[#allocation7 + $0xe0] sm:$0xff]
        %v430 = vld [vmem:[#allocation7 + $0xe8] sm:$0xff]
        %v431 = vld [vmem:[#allocation7 + $0xf0] sm:$0xff]
        %v432 = vld [vmem:[#allocation7 + $0xf8] sm:$0xff]
        %433 = vmatprep.subr.mxu0 0.0
        %434 = vmatpush1.msra.mxu0 %v416
        %435 = vmatprep.subr.mxu0 0.0
        %436 = vmatpush1.msra.mxu0 %v415
        %437 = vmatprep.subr.mxu0 0.0
        %438 = vmatpush1.msra.mxu0 %v414
        %439 = vmatprep.subr.mxu0 0.0
        %440 = vmatpush1.msra.mxu0 %v413
        %441 = vmatprep.subr.mxu0 0.0
        %442 = vmatpush1.msra.mxu0 %v412
        %443 = vmatprep.subr.mxu0 0.0
        %444 = vmatpush1.msra.mxu0 %v411
        %445 = vmatprep.subr.mxu0 0.0
        %446 = vmatpush1.msra.mxu0 %v410
        %447 = vmatprep.subr.mxu0 0.0
        %448 = vmatpush1.msra.mxu0 %v409
        %449 = vmatprep.subr.mxu0 0.0
        %450 = vmatpush1.msra.mxu0 %v408
        %451 = vmatprep.subr.mxu0 0.0
        %452 = vmatpush1.msra.mxu0 %v407
        %453 = vmatprep.subr.mxu0 0.0
        %454 = vmatpush1.msra.mxu0 %v406
        %455 = vmatprep.subr.mxu0 0.0
        %456 = vmatpush1.msra.mxu0 %v405
        %457 = vmatprep.subr.mxu0 0.0
        %458 = vmatpush1.msra.mxu0 %v404
        %459 = vmatprep.subr.mxu0 0.0
        %460 = vmatpush1.msra.mxu0 %v403
        %461 = vmatprep.subr.mxu0 0.0
        %462 = vmatpush1.msra.mxu0 %v402
        %463 = vmatprep.subr.mxu0 0.0
        %464 = vmatpush1.msra.mxu0 %v401
        %465 = vmatprep.subr.mxu0 0.0
        %466 = vmatpush2.msra.mxu0 %v432
        %467 = vmatprep.subr.mxu0 0.0
        %468 = vmatpush2.msra.mxu0 %v431
        %469 = vmatprep.subr.mxu0 0.0
        %470 = vmatpush2.msra.mxu0 %v430
        %471 = vmatprep.subr.mxu0 0.0
        %472 = vmatpush2.msra.mxu0 %v429
        %473 = vmatprep.subr.mxu0 0.0
        %474 = vmatpush2.msra.mxu0 %v428
        %475 = vmatprep.subr.mxu0 0.0
        %476 = vmatpush2.msra.mxu0 %v427
        %477 = vmatprep.subr.mxu0 0.0
        %478 = vmatpush2.msra.mxu0 %v426
        %479 = vmatprep.subr.mxu0 0.0
        %480 = vmatpush2.msra.mxu0 %v425
        %481 = vmatprep.subr.mxu0 0.0
        %482 = vmatpush2.msra.mxu0 %v424
        %483 = vmatprep.subr.mxu0 0.0
        %484 = vmatpush2.msra.mxu0 %v423
        %485 = vmatprep.subr.mxu0 0.0
        %486 = vmatpush2.msra.mxu0 %v422
        %487 = vmatprep.subr.mxu0 0.0
        %488 = vmatpush2.msra.mxu0 %v421
        %489 = vmatprep.subr.mxu0 0.0
        %490 = vmatpush2.msra.mxu0 %v420
        %491 = vmatprep.subr.mxu0 0.0
        %492 = vmatpush2.msra.mxu0 %v419
        %493 = vmatprep.subr.mxu0 0.0
        %494 = vmatpush2.msra.mxu0 %v418
        %495 = vmatprep.subr.mxu0 0.0
        %496 = vmatpush2.msra.mxu0 %v417
        %497 = vmatprep.mubr.f32.mxu0 %v398
        %498 = vmatmul.mubr.f32.gmra.mxu0 %v397
        %v499 = vpop.f32.mrf.mxu0
        %v500 = vadd.f32 0.0, %v499
        %v501 = vpop.f32.mrf.mxu0
        %502 = vmatprep.mubr.f32.mxu0 %v400
        %503 = vmatmul.mubr.f32.gmra.mxu0 %v399
        %v504 = vpop.f32.mrf.mxu0
        %v505 = vadd.f32 0.0, %v504
        %v506 = vpop.f32.mrf.mxu0
        %507 = vdwg.mxu0
        %v508 = vadd.f32 %v274, %v500
        %v509 = vadd.f32 %v275, %v505
        %v510 = vld [vmem:[%s4] sm:$0x1]
        %v511 = vlaneseq
        %v512 = vshrl.u32 %v511, 7
        %v513 = vsub.s32 0, %v512
        %v514 = vrot.slane %v510, %v513
        %v515 = vadd.f32 %v508, %v514
        %v516 = vadd.f32 %v509, %v514
        %517 = vadd.xlane.f32.xlu0 %v515
        %v518 = vpop.xlane.xlu0 %517
        %519 = vadd.xlane.f32.xlu0 %v516
        %v520 = vpop.xlane.xlu0 %519
        %v521 = vrcp.pop 128.0
        %v522 = vmul.f32 %v518, %v521
        %v523 = vmul.f32 %v520, %v521
        %v524 = vsub.f32 %v515, %v522
        %v525 = vsub.f32 %v516, %v523
        %v526 = vmul.f32 %v524, %v524
        %v527 = vmul.f32 %v525, %v525
        %528 = vadd.xlane.f32.xlu0 %v526
        %v529 = vpop.xlane.xlu0 %528
        %530 = vadd.xlane.f32.xlu0 %v527
        %v531 = vpop.xlane.xlu0 %530
        %v532 = vmul.f32 %v529, %v521
        %v533 = vmul.f32 %v531, %v521
        %v534 = vadd.f32 %v532, 1e-05
        %v535 = vadd.f32 %v533, 1e-05
        %v536 = vrsqrt.pop %v534
        %v537 = vrsqrt.pop %v535
        %v538 = vmul.f32 %v524, %v536
        %v539 = vmul.f32 %v525, %v537
        %v540 = vld [vmem:[%s4 + $0x1] sm:$0x1]
        %v541 = vlaneseq
        %v542 = vshrl.u32 %v541, 7
        %v543 = vsub.s32 0, %v542
        %v544 = vrot.slane %v540, %v543
        %v545 = vmul.f32 %v538, %v544
        %v546 = vmul.f32 %v539, %v544
        %v547 = vld [vmem:[%s4 + $0x2] sm:$0x1]
        %v548 = vlaneseq
        %v549 = vshrl.u32 %v548, 7
        %v550 = vsub.s32 0, %v549
        %v551 = vrot.slane %v547, %v550
        %v552 = vadd.f32 %v545, %v551
        %v553 = vadd.f32 %v546, %v551
        %554 = vst [vmem:[%s271] sm:$0xff] %v552
        %555 = vst [vmem:[%s271 + $0x8] sm:$0xff] %v553
        %s556 = sand.u32 %s141, 1
        %s557 = scalar_lea.sflag [#allocation4], %s556
        %s558 = sand.u32 %s141, 1
        %s559 = smul.addr %s558, 16
        %s560 = scalar_lea.vmem [#allocation8], %s559
        // Predicated region
        $region53: #{tpu_custom_call.1} parent=39 // pred_check
          %p561 = pneg %p151
        $region54: #{tpu_custom_call.1} parent=39 // pred_check_branch
          %563 = sbr.rel (%p561) target = $region56
        $region55: #{tpu_custom_call.1} parent=39 // pred_region
          %s564 = smul.u32 2, %s23
          %s566 = ssub.s32 256, 256
          %567 = vsyncadd %s557, %s566
          %s568 = smul.addr %s564, 128
          %s569 = scalar_lea.hbm %s5, %s568
          %s570 = sshll.u32 %s560, 4
          %s571 = int_to_ptr.vmem [resolvable:$true] %s570
          %576 = dma.vmem_to_hbm [thread:$0]  %s571, 256, %s569, %s557, 128, 128, 8
        $region56: #{tpu_custom_call.1} parent=39 // pred_fallthru
          _
      $region40: #{tpu_custom_call.1} parent=5 // pred_fallthru
        _
      %p577 = scmp.le.s32.totalorder 2, %s18
      // Predicated region
      $region57: #{tpu_custom_call.1} parent=5 // pred_check
        %p578 = pneg %p577
      $region58: #{tpu_custom_call.1} parent=5 // pred_check_branch
        %580 = sbr.rel (%p578) target = $region60
      $region59: #{tpu_custom_call.1} parent=5 // pred_region
        %s581 = ssub.s32 %s18, 2
        // Predicated region
        $region61: #{tpu_custom_call.1} parent=59 // pred_check
          %p582 = pneg %p157
        $region62: #{tpu_custom_call.1} parent=59 // pred_check_branch
          %584 = sbr.rel (%p582) target = $region64
        $region63: #{tpu_custom_call.1} parent=59 // pred_region
          %s585 = sand.u32 %s142, 1
          %s586 = scalar_lea.sflag [#allocation4], %s585
          %s587 = sand.u32 %s142, 1
          %s588 = smul.addr %s587, 16
          %s589 = scalar_lea.vmem [#allocation8], %s588
          %590 = dma.done %s586, 256
        $region64: #{tpu_custom_call.1} parent=59 // pred_fallthru
          _
      $region60: #{tpu_custom_call.1} parent=5 // pred_fallthru
        _
    $region6: #{tpu_custom_call.1} parent=1 // loop_footer
      %s22 = sadd.s32 1, %s18
    $region7: #{tpu_custom_call.1} parent=1 // loop_footer_branch
      %17 = sbr.rel target = $region3
    $region8: #{tpu_custom_call.1} parent=1 // loop_exit
      _
    %591 = vsyncpa [#allocation3], 1
    %s592 = scalar_lea.sflag [#allocation3], 1
    %593 = vsyncpa %s592, 1
    %594 = vsyncpa [#allocation6], 1
    %595 = vsyncpa [#allocation4], 1
    %s596 = scalar_lea.sflag [#allocation4], 1
    %597 = vsyncpa %s596, 1

</llo_original>
